<compile_context>
chip_gen: v7x
topology: tpu7x:2x2x1
jax: 0.10.0
libtpu: 0.0.40
codegen_flags: <defaults>
</compile_context>

<pallas_src>
import functools
import math

import jax
import jax.numpy as jnp
from jax import lax
from jax.experimental import pallas as pl
from jax.experimental.pallas import tpu as pltpu

LN_EPS = 1e-5  # nn.LayerNorm default


def _round_up(v, m):
    return (v + m - 1) // m * m


def _gelu_exact(x):
    # PyTorch nn.GELU() default = exact (erf-based) GELU.
    return 0.5 * x * (1.0 + lax.erf(x * (1.0 / math.sqrt(2.0))))


def mlp_kernel(x_ref, gamma_ref, beta_ref, w1_ref, b1_ref, w2_ref, b2_ref, o_ref,
               *, approximate_gelu):
    # ---- LayerNorm over channels, statistics in f32 ----
    x = x_ref[...].astype(jnp.float32)                 # (tile_rows, C)
    mean = jnp.mean(x, axis=-1, keepdims=True)
    xc = x - mean
    var = jnp.mean(xc * xc, axis=-1, keepdims=True)
    inv = lax.rsqrt(var + LN_EPS)
    # gamma/beta are f32 (1, C); implicit broadcast, no explicit broadcast_to.
    xn = xc * inv * gamma_ref[...] + beta_ref[...]

    # ---- fc1: bf16 operands, f32 accumulation (H lane-dense: padded to 128) --
    h = jnp.dot(xn.astype(jnp.bfloat16), w1_ref[...],
                preferred_element_type=jnp.float32) + b1_ref[...]

    # ---- activation ----
    if approximate_gelu:
        # tanh form routes through the otherwise-idle EUP slot (faster, tiny
        # numeric difference vs PyTorch's exact GELU).
        h = jax.nn.gelu(h, approximate=True)
    else:
        h = _gelu_exact(h)
    # TODO(synk): nn.Dropout skipped (p=0.0 / eval mode -> identity).

    # ---- fc2: bf16 operands, f32 accumulation (O lane-dense: padded to 128) --
    y = jnp.dot(h.astype(jnp.bfloat16), w2_ref[...],
                preferred_element_type=jnp.float32) + b2_ref[...]

    o_ref[...] = y.astype(o_ref.dtype)


def _select_tile_rows(requested, rows, C, H_p, O_p, in_bytes, out_bytes,
                      budget_bytes=24 << 20):
    """Largest 8-aligned row tile <= requested that fits the VMEM budget."""
    const_bytes = C * H_p * 2 + H_p * O_p * 2 + (2 * C + H_p + O_p) * 4
    tile = max(8, min(_round_up(requested, 8), _round_up(rows, 8)))

    def est(t):
        stream = 2 * t * C * in_bytes + 2 * t * O_p * out_bytes   # double-buffered I/O
        interm = t * C * (4 + 2) + t * H_p * (4 + 2) + t * O_p * 4
        return const_bytes + stream + interm

    while tile > 8 and est(tile) > budget_bytes:
        tile = max(8, _round_up(tile // 2, 8))
    return tile


def mlp_forward(x, gamma, beta, w1, b1, w2, b2, *, tile_rows=256,
                approximate_gelu=False):
    """x: (B, N, C) -> (B, N, out_features).
       gamma/beta: (C,), w1: (C, H), b1: (H,), w2: (H, O), b2: (O,)."""
    B, N, C = x.shape
    H = w1.shape[1]
    O = w2.shape[1]
    rows = B * N

    # Lane-dense hidden / output channel padding (weights only; activations
    # are never padded along C, so no extra HBM traffic for x).
    H_p = _round_up(H, 128)
    O_p = _round_up(O, 128)

    in_bytes = jnp.dtype(x.dtype).itemsize
    out_bytes = in_bytes
    tile_rows = _select_tile_rows(tile_rows, rows, C, H_p, O_p,
                                  in_bytes, out_bytes)
    rows_p = _round_up(rows, tile_rows)

    x2d = x.reshape(rows, C)
    if rows_p != rows:
        x2d = jnp.pad(x2d, ((0, rows_p - rows), (0, 0)))

    # bf16 MXU operands; f32 affine/bias params (small, added post-accumulation).
    w1b = w1.astype(jnp.bfloat16)
    b1p = b1.astype(jnp.float32)
    w2b = w2.astype(jnp.bfloat16)
    b2p = b2.astype(jnp.float32)
    if H_p != H:
        w1b = jnp.pad(w1b, ((0, 0), (0, H_p - H)))
        b1p = jnp.pad(b1p, (0, H_p - H))
        w2b = jnp.pad(w2b, ((0, H_p - H), (0, 0)))
    if O_p != O:
        w2b = jnp.pad(w2b, ((0, 0), (0, O_p - O)))
        b2p = jnp.pad(b2p, (0, O_p - O))

    gamma2d = gamma.astype(jnp.float32).reshape(1, C)
    beta2d = beta.astype(jnp.float32).reshape(1, C)
    b1_2d = b1p.reshape(1, H_p)
    b2_2d = b2p.reshape(1, O_p)

    grid = (rows_p // tile_rows,)

    # Grid-invariant operands: single-buffered (halves their resident VMEM).
    def const_spec(shape):
        return pl.BlockSpec(shape, lambda i: (0, 0),
                            pipeline_mode=pl.Buffered(1))

    cost = pl.CostEstimate(
        flops=2 * rows * (C * H + H * O),
        transcendentals=rows * H,
        bytes_accessed=(rows * C * in_bytes + rows * O_p * out_bytes
                        + C * H_p * 2 + H_p * O_p * 2),
    )

    out2d = pl.pallas_call(
        functools.partial(mlp_kernel, approximate_gelu=approximate_gelu),
        out_shape=jax.ShapeDtypeStruct((rows_p, O_p), x.dtype),
        grid_spec=pltpu.PrefetchScalarGridSpec(
            num_scalar_prefetch=0,
            grid=grid,
            in_specs=[
                pl.BlockSpec((tile_rows, C), lambda i: (i, 0)),   # x tile (streamed)
                const_spec((1, C)),                               # gamma
                const_spec((1, C)),                               # beta
                const_spec((C, H_p)),                             # w1 (bf16, padded)
                const_spec((1, H_p)),                             # b1 (padded)
                const_spec((H_p, O_p)),                           # w2 (bf16, padded)
                const_spec((1, O_p)),                             # b2 (padded)
            ],
            out_specs=pl.BlockSpec((tile_rows, O_p), lambda i: (i, 0)),
        ),
        compiler_params=pltpu.CompilerParams(
            dimension_semantics=("parallel",),    # row axis: megacore-parallel
            vmem_limit_bytes=32 << 20),
        cost_estimate=cost,
    )(x2d, gamma2d, beta2d, w1b, b1_2d, w2b, b2_2d)

    return out2d[:rows, :O].reshape(B, N, O)


def mlp_reference(x, gamma, beta, w1, b1, w2, b2):
    x = x.astype(jnp.float32)
    mean = jnp.mean(x, axis=-1, keepdims=True)
    var = jnp.mean((x - mean) ** 2, axis=-1, keepdims=True)
    xn = (x - mean) / jnp.sqrt(var + LN_EPS) * gamma + beta
    h = _gelu_exact(xn @ w1 + b1)
    return h @ w2 + b2


if __name__ == "__main__":
    # Small shapes consistent with the module's forward: x of shape (B, N, C).
    # N=10 deliberately exercises the row-padding path; H=64 / O=32 exercise
    # the lane-dense hidden/output padding (-> 128 -> slice back).
    B, N = 2, 10
    in_features, hidden_features, out_features = 32, 64, 32

    key = jax.random.PRNGKey(0)
    kx, kg, kb, kw1, kb1, kw2, kb2 = jax.random.split(key, 7)

    x = jax.random.normal(kx, (B, N, in_features), dtype=jnp.float32)

    # Deterministic synthetic parameters (shapes from Mlp.__init__).
    gamma = 1.0 + 0.01 * jax.random.normal(kg, (in_features,), dtype=jnp.float32)
    beta = 0.01 * jax.random.normal(kb, (in_features,), dtype=jnp.float32)
    w1 = jax.random.normal(kw1, (in_features, hidden_features), dtype=jnp.float32) * 0.1
    b1 = 0.01 * jax.random.normal(kb1, (hidden_features,), dtype=jnp.float32)
    w2 = jax.random.normal(kw2, (hidden_features, out_features), dtype=jnp.float32) * 0.1
    b2 = 0.01 * jax.random.normal(kb2, (out_features,), dtype=jnp.float32)

    out = mlp_forward(x, gamma, beta, w1, b1, w2, b2)
    out = jax.block_until_ready(out)

    ref = mlp_reference(x, gamma, beta, w1, b1, w2, b2)
    assert out.shape == (B, N, out_features)
    # bf16 MXU operands (f32 accumulation) -> slightly looser tolerance vs the
    # full-f32 reference.
    assert jnp.allclose(out, ref, atol=3e-2, rtol=3e-2), "mismatch vs reference"

    print("KERNEL_OK")
</pallas_src>

<mosaic_0001>
module attributes {stable_mosaic.version = 11 : i64} {
  func.func @mlp_kernel(%arg0: i32, %arg1: memref<24x32xf32, #tpu.memory_space<vmem>>, %arg2: memref<1x32xf32, #tpu.memory_space<vmem>>, %arg3: memref<1x32xf32, #tpu.memory_space<vmem>>, %arg4: memref<32x128xbf16, #tpu.memory_space<vmem>>, %arg5: memref<1x128xf32, #tpu.memory_space<vmem>>, %arg6: memref<128x128xbf16, #tpu.memory_space<vmem>>, %arg7: memref<1x128xf32, #tpu.memory_space<vmem>>, %arg8: memref<24x128xf32, #tpu.memory_space<vmem>>) attributes {dimension_semantics = [#tpu.dimension_semantics<parallel>], iteration_bounds = array<i64: 1>, scalar_prefetch = 0 : i64, scratch_operands = 0 : i64, tpu.core_type = #tpu.core_type<tc>, window_params = [{transform_indices = @transform_0, window_bounds = array<i64: 24, 32>}, {pipeline_mode = #tpu.pipeline_mode<synchronous>, transform_indices = @transform_1, window_bounds = array<i64: 1, 32>}, {pipeline_mode = #tpu.pipeline_mode<synchronous>, transform_indices = @transform_2, window_bounds = array<i64: 1, 32>}, {pipeline_mode = #tpu.pipeline_mode<synchronous>, transform_indices = @transform_3, window_bounds = array<i64: 32, 128>}, {pipeline_mode = #tpu.pipeline_mode<synchronous>, transform_indices = @transform_4, window_bounds = array<i64: 1, 128>}, {pipeline_mode = #tpu.pipeline_mode<synchronous>, transform_indices = @transform_5, window_bounds = array<i64: 128, 128>}, {pipeline_mode = #tpu.pipeline_mode<synchronous>, transform_indices = @transform_6, window_bounds = array<i64: 1, 128>}, {transform_indices = @transform_7, window_bounds = array<i64: 24, 128>}]} {
    %c0 = arith.constant 0 : index
    %c0_0 = arith.constant 0 : index
    %0 = vector.load %arg1[%c0, %c0_0] : memref<24x32xf32, #tpu.memory_space<vmem>>, vector<24x32xf32>
    %cst = arith.constant dense<0.000000e+00> : vector<24xf32>
    %1 = vector.multi_reduction <add>, %0, %cst [1] : vector<24x32xf32> to vector<24xf32>
    %2 = vector.shape_cast %1 : vector<24xf32> to vector<24x1xf32>
    %cst_1 = arith.constant 3.200000e+01 : f32
    %3 = vector.broadcast %cst_1 : f32 to vector<24x1xf32>
    %4 = arith.divf %2, %3 : vector<24x1xf32>
    %5 = vector.broadcast %4 : vector<24x1xf32> to vector<24x32xf32>
    %6 = arith.subf %0, %5 : vector<24x32xf32>
    %7 = arith.mulf %6, %6 : vector<24x32xf32>
    %cst_2 = arith.constant dense<0.000000e+00> : vector<24xf32>
    %8 = vector.multi_reduction <add>, %7, %cst_2 [1] : vector<24x32xf32> to vector<24xf32>
    %9 = vector.shape_cast %8 : vector<24xf32> to vector<24x1xf32>
    %cst_3 = arith.constant 3.200000e+01 : f32
    %10 = vector.broadcast %cst_3 : f32 to vector<24x1xf32>
    %11 = arith.divf %9, %10 : vector<24x1xf32>
    %cst_4 = arith.constant 9.99999974E-6 : f32
    %12 = vector.broadcast %cst_4 : f32 to vector<24x1xf32>
    %13 = arith.addf %11, %12 : vector<24x1xf32>
    %14 = math.rsqrt %13 : vector<24x1xf32>
    %15 = vector.broadcast %14 : vector<24x1xf32> to vector<24x32xf32>
    %16 = arith.mulf %6, %15 : vector<24x32xf32>
    %c0_5 = arith.constant 0 : index
    %c0_6 = arith.constant 0 : index
    %17 = vector.load %arg2[%c0_5, %c0_6] : memref<1x32xf32, #tpu.memory_space<vmem>>, vector<1x32xf32>
    %18 = vector.broadcast %17 : vector<1x32xf32> to vector<24x32xf32>
    %19 = arith.mulf %16, %18 : vector<24x32xf32>
    %c0_7 = arith.constant 0 : index
    %c0_8 = arith.constant 0 : index
    %20 = vector.load %arg3[%c0_7, %c0_8] : memref<1x32xf32, #tpu.memory_space<vmem>>, vector<1x32xf32>
    %21 = vector.broadcast %20 : vector<1x32xf32> to vector<24x32xf32>
    %22 = arith.addf %19, %21 : vector<24x32xf32>
    %23 = arith.truncf %22 : vector<24x32xf32> to vector<24x32xbf16>
    %c0_9 = arith.constant 0 : index
    %c0_10 = arith.constant 0 : index
    %24 = vector.load %arg4[%c0_9, %c0_10] : memref<32x128xbf16, #tpu.memory_space<vmem>>, vector<32x128xbf16>
    %cst_11 = arith.constant dense<0.000000e+00> : vector<24x128xf32>
    %25 = tpu.matmul %23, %24, %cst_11 {dimension_numbers = #tpu.dot_dimension_numbers<[1], [0], [0], [1], [0, 0, 1, 1], [], []>} : vector<24x32xbf16>, vector<32x128xbf16>, vector<24x128xf32> -> vector<24x128xf32>
    %c0_12 = arith.constant 0 : index
    %c0_13 = arith.constant 0 : index
    %26 = vector.load %arg5[%c0_12, %c0_13] : memref<1x128xf32, #tpu.memory_space<vmem>>, vector<1x128xf32>
    %27 = vector.broadcast %26 : vector<1x128xf32> to vector<24x128xf32>
    %28 = arith.addf %25, %27 : vector<24x128xf32>
    %cst_14 = arith.constant 5.000000e-01 : f32
    %29 = vector.broadcast %cst_14 : f32 to vector<24x128xf32>
    %30 = arith.mulf %29, %28 : vector<24x128xf32>
    %cst_15 = arith.constant 0.707106769 : f32
    %31 = vector.broadcast %cst_15 : f32 to vector<24x128xf32>
    %32 = arith.mulf %28, %31 : vector<24x128xf32>
    %33 = math.erf %32 : vector<24x128xf32>
    %cst_16 = arith.constant 1.000000e+00 : f32
    %34 = vector.broadcast %cst_16 : f32 to vector<24x128xf32>
    %35 = arith.addf %34, %33 : vector<24x128xf32>
    %36 = arith.mulf %30, %35 : vector<24x128xf32>
    %37 = arith.truncf %36 : vector<24x128xf32> to vector<24x128xbf16>
    %c0_17 = arith.constant 0 : index
    %c0_18 = arith.constant 0 : index
    %38 = vector.load %arg6[%c0_17, %c0_18] : memref<128x128xbf16, #tpu.memory_space<vmem>>, vector<128x128xbf16>
    %cst_19 = arith.constant dense<0.000000e+00> : vector<24x128xf32>
    %39 = tpu.matmul %37, %38, %cst_19 {dimension_numbers = #tpu.dot_dimension_numbers<[1], [0], [0], [1], [0, 0, 1, 1], [], []>} : vector<24x128xbf16>, vector<128x128xbf16>, vector<24x128xf32> -> vector<24x128xf32>
    %c0_20 = arith.constant 0 : index
    %c0_21 = arith.constant 0 : index
    %40 = vector.load %arg7[%c0_20, %c0_21] : memref<1x128xf32, #tpu.memory_space<vmem>>, vector<1x128xf32>
    %41 = vector.broadcast %40 : vector<1x128xf32> to vector<24x128xf32>
    %42 = arith.addf %39, %41 : vector<24x128xf32>
    %c0_22 = arith.constant 0 : index
    %c0_23 = arith.constant 0 : index
    %43 = vector.load %arg8[%c0_22, %c0_23] : memref<24x128xf32, #tpu.memory_space<vmem>>, vector<24x128xf32>
    tpu.vector_store %arg8[%c0_22, %c0_23], %42 {strides = array<i32>} : memref<24x128xf32, #tpu.memory_space<vmem>>, vector<24x128xf32>,
    return
  }
  func.func @transform_0(%arg0: i32) -> (i32, i32) {
    %c0_i32 = arith.constant 0 : i32
    %c0_i32_0 = arith.constant 0 : i32
    return %arg0, %c0_i32 : i32, i32
  }
  func.func @transform_1(%arg0: i32) -> (i32, i32) {
    %c0_i32 = arith.constant 0 : i32
    %c0_i32_0 = arith.constant 0 : i32
    %c0_i32_1 = arith.constant 0 : i32
    return %c0_i32, %c0_i32_0 : i32, i32
  }
  func.func @transform_2(%arg0: i32) -> (i32, i32) {
    %c0_i32 = arith.constant 0 : i32
    %c0_i32_0 = arith.constant 0 : i32
    %c0_i32_1 = arith.constant 0 : i32
    return %c0_i32, %c0_i32_0 : i32, i32
  }
  func.func @transform_3(%arg0: i32) -> (i32, i32) {
    %c0_i32 = arith.constant 0 : i32
    %c0_i32_0 = arith.constant 0 : i32
    %c0_i32_1 = arith.constant 0 : i32
    return %c0_i32, %c0_i32_0 : i32, i32
  }
  func.func @transform_4(%arg0: i32) -> (i32, i32) {
    %c0_i32 = arith.constant 0 : i32
    %c0_i32_0 = arith.constant 0 : i32
    %c0_i32_1 = arith.constant 0 : i32
    return %c0_i32, %c0_i32_0 : i32, i32
  }
  func.func @transform_5(%arg0: i32) -> (i32, i32) {
    %c0_i32 = arith.constant 0 : i32
    %c0_i32_0 = arith.constant 0 : i32
    %c0_i32_1 = arith.constant 0 : i32
    return %c0_i32, %c0_i32_0 : i32, i32
  }
  func.func @transform_6(%arg0: i32) -> (i32, i32) {
    %c0_i32 = arith.constant 0 : i32
    %c0_i32_0 = arith.constant 0 : i32
    %c0_i32_1 = arith.constant 0 : i32
    return %c0_i32, %c0_i32_0 : i32, i32
  }
  func.func @transform_7(%arg0: i32) -> (i32, i32) {
    %c0_i32 = arith.constant 0 : i32
    %c0_i32_0 = arith.constant 0 : i32
    return %arg0, %c0_i32 : i32, i32
  }
}

</mosaic_0001>

<llo_original>
// kernel: tpu_custom_call.1
$region0: #{tpu_custom_call.1}
  #allocation0 [shape = 'u32[]', space=smem, size = 0x4, offset = 0x4, fixed_abs, tag = 'smem constant byte address 0x4 - core index']
  #allocation1 [shape = 'u32[144,128]{1,0:T(1,128)}', space=vmem, size = 0x12000, scoped, tag = 'internal scratch']
  %s0 = inlined_call_operand.hbm [shape: f32[24,32], index: 0, kind: input, shape index: {}]
  %s1 = inlined_call_operand.vmem [shape: f32[1,32], index: 1, kind: input, shape index: {}]
  %s2 = inlined_call_operand.vmem [shape: f32[1,32], index: 2, kind: input, shape index: {}]
  %s3 = inlined_call_operand.hbm [shape: bf16[32,128], index: 3, kind: input, shape index: {}]
  %s4 = inlined_call_operand.vmem [shape: f32[1,128], index: 4, kind: input, shape index: {}]
  %s5 = inlined_call_operand.hbm [shape: bf16[128,128], index: 5, kind: input, shape index: {}]
  %s6 = inlined_call_operand.vmem [shape: f32[1,128], index: 6, kind: input, shape index: {}]
  %s7 = inlined_call_operand.hbm [shape: f32[24,128], index: 7, kind: output, shape index: {}]
  %s8 = sld [smem:[#allocation0]]
  $region50: #{tpu_custom_call.1} parent=0
    _
  %s10 = ssub.s32 1, %s8
  %s11 = scalar_select 0, %s10, %s8
  $region1: #{tpu_custom_call.1} parent=0
    #allocation2 [shape = 'u8[12288]{0}', space=vmem, size = 0x3000, scoped, tag = 'input window, operand 0, single buffered']
    #allocation3 [shape = 's32[1]{0}', space=sflag, size = 0x4, scoped, tag = 'scoped memory for tpu_custom_call.1']
    #allocation4 [shape = 's32[1]{0}', space=sflag, size = 0x4, scoped, tag = 'scoped memory for tpu_custom_call.1']
    #allocation5 [shape = 'u8[8192]{0}', space=vmem, size = 0x2000, scoped, tag = 'input window, operand 3, single buffered']
    #allocation6 [shape = 's32[1]{0}', space=sflag, size = 0x4, scoped, tag = 'scoped memory for tpu_custom_call.1']
    #allocation7 [shape = 'u8[32768]{0}', space=vmem, size = 0x8000, scoped, tag = 'input window, operand 5, single buffered']
    #allocation8 [shape = 'u8[12288]{0}', space=vmem, size = 0x3000, scoped, tag = 'output window, operand 0, single buffered']
    %12 = vsyncpa [#allocation3], 0
    %13 = vsyncpa [#allocation6], 0
    %14 = vsyncpa [#allocation4], 0
    // Predicated region
    $region2: #{tpu_custom_call.1} parent=1 // pred_check
      _
    $region3: #{tpu_custom_call.1} parent=1 // pred_check_branch
      %16 = sbr.rel (0) target = $region5
    $region4: #{tpu_custom_call.1} parent=1 // pred_region
      %s18 = ssub.s32 384, 384
      %19 = vsyncadd [#allocation3], %s18
      %s20 = sshll.u32 [#allocation2], 4
      %s21 = int_to_ptr.vmem [resolvable:$true] %s20
      %26 = dma.hbm_to_vmem [thread:$0]  %s0, 384, %s21, [#allocation3], 128, 128, 8
    $region5: #{tpu_custom_call.1} parent=1 // pred_fallthru
      _
    // Predicated region
    $region6: #{tpu_custom_call.1} parent=1 // pred_check
      _
    $region7: #{tpu_custom_call.1} parent=1 // pred_check_branch
      %28 = sbr.rel (0) target = $region9
    $region8: #{tpu_custom_call.1} parent=1 // pred_region
      _
    $region9: #{tpu_custom_call.1} parent=1 // pred_fallthru
      _
    // Predicated region
    $region10: #{tpu_custom_call.1} parent=1 // pred_check
      _
    $region11: #{tpu_custom_call.1} parent=1 // pred_check_branch
      %30 = sbr.rel (0) target = $region13
    $region12: #{tpu_custom_call.1} parent=1 // pred_region
      _
    $region13: #{tpu_custom_call.1} parent=1 // pred_fallthru
      _
    // Predicated region
    $region14: #{tpu_custom_call.1} parent=1 // pred_check
      _
    $region15: #{tpu_custom_call.1} parent=1 // pred_check_branch
      %32 = sbr.rel (0) target = $region17
    $region16: #{tpu_custom_call.1} parent=1 // pred_region
      %s34 = ssub.s32 256, 256
      %35 = vsyncadd [#allocation6], %s34
      %s36 = sshll.u32 [#allocation5], 4
      %s37 = int_to_ptr.vmem [resolvable:$true] %s36
      %42 = dma.hbm_to_vmem [thread:$0]  %s3, 256, %s37, [#allocation6], 64, 64, 4
    $region17: #{tpu_custom_call.1} parent=1 // pred_fallthru
      _
    // Predicated region
    $region18: #{tpu_custom_call.1} parent=1 // pred_check
      _
    $region19: #{tpu_custom_call.1} parent=1 // pred_check_branch
      %44 = sbr.rel (0) target = $region21
    $region20: #{tpu_custom_call.1} parent=1 // pred_region
      _
    $region21: #{tpu_custom_call.1} parent=1 // pred_fallthru
      _
    // Predicated region
    $region22: #{tpu_custom_call.1} parent=1 // pred_check
      _
    $region23: #{tpu_custom_call.1} parent=1 // pred_check_branch
      %46 = sbr.rel (0) target = $region25
    $region24: #{tpu_custom_call.1} parent=1 // pred_region
      %s48 = ssub.s32 1024, 1024
      %49 = vsyncadd [#allocation6], %s48
      %s50 = sshll.u32 [#allocation7], 4
      %s51 = int_to_ptr.vmem [resolvable:$true] %s50
      %56 = dma.hbm_to_vmem [thread:$0]  %s5, 1024, %s51, [#allocation6], 64, 64, 4
    $region25: #{tpu_custom_call.1} parent=1 // pred_fallthru
      _
    // Predicated region
    $region26: #{tpu_custom_call.1} parent=1 // pred_check
      _
    $region27: #{tpu_custom_call.1} parent=1 // pred_check_branch
      %58 = sbr.rel (0) target = $region29
    $region28: #{tpu_custom_call.1} parent=1 // pred_region
      _
    $region29: #{tpu_custom_call.1} parent=1 // pred_fallthru
      _
    // Predicated region
    $region30: #{tpu_custom_call.1} parent=1 // pred_check
      _
    $region31: #{tpu_custom_call.1} parent=1 // pred_check_branch
      %60 = sbr.rel (0) target = $region33
    $region32: #{tpu_custom_call.1} parent=1 // pred_region
      %61 = dma.done [#allocation3], 384
    $region33: #{tpu_custom_call.1} parent=1 // pred_fallthru
      _
    // Predicated region
    $region34: #{tpu_custom_call.1} parent=1 // pred_check
      _
    $region35: #{tpu_custom_call.1} parent=1 // pred_check_branch
      %63 = sbr.rel (0) target = $region37
    $region36: #{tpu_custom_call.1} parent=1 // pred_region
      %64 = dma.done [#allocation6], 256
    $region37: #{tpu_custom_call.1} parent=1 // pred_fallthru
      _
    // Predicated region
    $region38: #{tpu_custom_call.1} parent=1 // pred_check
      _
    $region39: #{tpu_custom_call.1} parent=1 // pred_check_branch
      %66 = sbr.rel (0) target = $region41
    $region40: #{tpu_custom_call.1} parent=1 // pred_region
      %67 = dma.done [#allocation6], 1024
    $region41: #{tpu_custom_call.1} parent=1 // pred_fallthru
      _
    %v69 = vld [vmem:[#allocation2] sm:$0xff]
    %v70 = vld [vmem:[#allocation2 + $0x8] sm:$0xff]
    %v71 = vld [vmem:[#allocation2 + $0x10] sm:$0xff]
    %vm72 = vcmask 261120
    %v73 = vsel %vm72, %v69, 0.0
    %74 = vadd.xlane.f32.xlu0 %v73
    %v75 = vpop.xlane.xlu0 %74
    %v76 = vsel %vm72, %v70, 0.0
    %77 = vadd.xlane.f32.xlu0 %v76
    %v78 = vpop.xlane.xlu0 %77
    %v79 = vsel %vm72, %v71, 0.0
    %80 = vadd.xlane.f32.xlu0 %v79
    %v81 = vpop.xlane.xlu0 %80
    %v82 = vrcp.pop 32.0
    %v83 = vmul.f32 %v75, %v82
    %v84 = vmul.f32 %v78, %v82
    %v85 = vmul.f32 %v81, %v82
    %v86 = vsub.f32 %v69, %v83
    %v87 = vsub.f32 %v70, %v84
    %v88 = vsub.f32 %v71, %v85
    %v89 = vmul.f32 %v86, %v86
    %v90 = vmul.f32 %v87, %v87
    %v91 = vmul.f32 %v88, %v88
    %v92 = vsel %vm72, %v89, 0.0
    %93 = vadd.xlane.f32.xlu0 %v92
    %v94 = vpop.xlane.xlu0 %93
    %v95 = vsel %vm72, %v90, 0.0
    %96 = vadd.xlane.f32.xlu0 %v95
    %v97 = vpop.xlane.xlu0 %96
    %v98 = vsel %vm72, %v91, 0.0
    %99 = vadd.xlane.f32.xlu0 %v98
    %v100 = vpop.xlane.xlu0 %99
    %v101 = vmul.f32 %v94, %v82
    %v102 = vmul.f32 %v97, %v82
    %v103 = vmul.f32 %v100, %v82
    %v104 = vadd.f32 %v101, 1e-05
    %v105 = vadd.f32 %v102, 1e-05
    %v106 = vadd.f32 %v103, 1e-05
    %v107 = vrsqrt.pop %v104
    %v108 = vrsqrt.pop %v105
    %v109 = vrsqrt.pop %v106
    %v110 = vmul.f32 %v86, %v107
    %v111 = vmul.f32 %v87, %v108
    %v112 = vmul.f32 %v88, %v109
    %v113 = vld [vmem:[%s1] sm:$0x1]
    %v115 = vlaneseq
    %v116 = vshrl.u32 %v115, 7
    %v117 = vsub.s32 0, %v116
    %v118 = vrot.slane %v113, %v117
    %v120 = vmul.f32 %v110, %v118
    %v121 = vmul.f32 %v111, %v118
    %v122 = vmul.f32 %v112, %v118
    %v123 = vld [vmem:[%s2] sm:$0x1]
    %v125 = vlaneseq
    %v126 = vshrl.u32 %v125, 7
    %v127 = vsub.s32 0, %v126
    %v128 = vrot.slane %v123, %v127
    %v130 = vadd.f32 %v120, %v128
    %v131 = vadd.f32 %v121, %v128
    %v132 = vadd.f32 %v122, %v128
    %v133 = vpack.c.bf16 %v131, %v130
    %v134 = vpack.c.bf16 %v132, %v132
    %v135 = vld [vmem:[#allocation5] sm:$0xf]
    %v136 = vld [vmem:[#allocation5 + $0x4] sm:$0xf]
    %v137 = vld [vmem:[#allocation5 + $0x8] sm:$0xf]
    %v138 = vld [vmem:[#allocation5 + $0xc] sm:$0xf]
    %v139 = vld [vmem:[%s4] sm:$0x1]
    %v141 = vlaneseq
    %v142 = vshrl.u32 %v141, 7
    %v143 = vsub.s32 0, %v142
    %v144 = vrot.slane %v139, %v143
    %v150 = vunpack.c.l.b16 %v135
    %v151 = vunpack.c.l.b16 %v136
    %v152 = vunpack.c.l.b16 %v137
    %v153 = vunpack.c.l.b16 %v138
    %v154 = vpack.c.b16 %v151, %v150
    %v155 = vpack.c.b16 %v153, %v152
    %v159 = vsel %vm72, %v133, 0
    %v162 = vsel %vm72, %v134, 0
    %164 = vmatprep.subr.bf16.mxu0 0
    %165 = vmatpush1.bf16.msra.mxu0 %v154
    %166 = vmatprep.subr.bf16.mxu0 0
    %167 = vmatpush1.bf16.msra.mxu0 %v155
    %168 = vmatprep.subr.bf16.mxu0 0
    %169 = vmatpush1.bf16.msra.mxu0 0
    %170 = vmatprep.subr.bf16.mxu0 0
    %171 = vmatpush1.bf16.msra.mxu0 0
    %172 = vmatprep.subr.bf16.mxu0 0
    %173 = vmatpush1.bf16.msra.mxu0 0
    %174 = vmatprep.subr.bf16.mxu0 0
    %175 = vmatpush1.bf16.msra.mxu0 0
    %176 = vmatprep.subr.bf16.mxu0 0
    %177 = vmatpush1.bf16.msra.mxu0 0
    %178 = vmatprep.subr.bf16.mxu0 0
    %179 = vmatpush1.bf16.msra.mxu0 0
    %180 = vmatprep.subr.bf16.mxu0 0
    %181 = vmatpush1.bf16.msra.mxu0 0
    %182 = vmatprep.subr.bf16.mxu0 0
    %183 = vmatpush1.bf16.msra.mxu0 0
    %184 = vmatprep.subr.bf16.mxu0 0
    %185 = vmatpush1.bf16.msra.mxu0 0
    %186 = vmatprep.subr.bf16.mxu0 0
    %187 = vmatpush1.bf16.msra.mxu0 0
    %188 = vmatprep.subr.bf16.mxu0 0
    %189 = vmatpush1.bf16.msra.mxu0 0
    %190 = vmatprep.subr.bf16.mxu0 0
    %191 = vmatpush1.bf16.msra.mxu0 0
    %192 = vmatprep.subr.bf16.mxu0 0
    %193 = vmatpush1.bf16.msra.mxu0 0
    %194 = vmatprep.subr.bf16.mxu0 0
    %195 = vmatpush1.bf16.msra.mxu0 0
    %196 = vmatprep.mubr.bf16.mxu0 0
    %197 = vmatmul.mubr.bf16.gmra.mrb[0].mxu0 %v159
    %v198 = vpop.f32.mrb[0].mxu0
    %v199 = vadd.f32 %v144, %v198
    %v200 = vpop.f32.mrb[0].mxu0
    %v201 = vpop.f32.mrb[0].mxu0
    %v202 = vadd.f32 %v144, %v201
    %v203 = vpop.f32.mrb[0].mxu0
    %204 = vmatprep.mubr.bf16.mxu0 0
    %205 = vmatmul.mubr.bf16.gmra.mrb[0].mxu0 %v162
    %v206 = vpop.f32.mrb[0].mxu0
    %v207 = vadd.f32 %v144, %v206
    %v208 = vpop.f32.mrb[0].mxu0
    %v209 = vpop.f32.mrb[0].mxu0
    %v210 = vpop.f32.mrb[0].mxu0
    %211 = vdwg.mxu0
    %v212 = vmul.f32 %v199, 0.5
    %v213 = vmul.f32 %v202, 0.5
    %v214 = vmul.f32 %v207, 0.5
    %v215 = vmul.f32 %v199, 0.70710677
    %v216 = vmul.f32 %v202, 0.70710677
    %v217 = vmul.f32 %v207, 0.70710677
    %v218 = verf.f32.pop %v215
    %v219 = verf.f32.pop %v216
    %v220 = verf.f32.pop %v217
    %v221 = vadd.f32 %v218, 1.0
    %v222 = vadd.f32 %v219, 1.0
    %v223 = vadd.f32 %v220, 1.0
    %v224 = vmul.f32 %v212, %v221
    %v225 = vmul.f32 %v213, %v222
    %v226 = vmul.f32 %v214, %v223
    %v227 = vpack.c.bf16 %v225, %v224
    %v228 = vpack.c.bf16 %v226, %v226
    %v229 = vld [vmem:[#allocation7] sm:$0xf]
    %v230 = vld [vmem:[#allocation7 + $0x4] sm:$0xf]
    %v231 = vld [vmem:[#allocation7 + $0x8] sm:$0xf]
    %v232 = vld [vmem:[#allocation7 + $0xc] sm:$0xf]
    %v233 = vld [vmem:[#allocation7 + $0x10] sm:$0xf]
    %v234 = vld [vmem:[#allocation7 + $0x14] sm:$0xf]
    %v235 = vld [vmem:[#allocation7 + $0x18] sm:$0xf]
    %v236 = vld [vmem:[#allocation7 + $0x1c] sm:$0xf]
    %v237 = vld [vmem:[#allocation7 + $0x20] sm:$0xf]
    %v238 = vld [vmem:[#allocation7 + $0x24] sm:$0xf]
    %v239 = vld [vmem:[#allocation7 + $0x28] sm:$0xf]
    %v240 = vld [vmem:[#allocation7 + $0x2c] sm:$0xf]
    %v241 = vld [vmem:[#allocation7 + $0x30] sm:$0xf]
    %v242 = vld [vmem:[#allocation7 + $0x34] sm:$0xf]
    %v243 = vld [vmem:[#allocation7 + $0x38] sm:$0xf]
    %v244 = vld [vmem:[#allocation7 + $0x3c] sm:$0xf]
    %v245 = vld [vmem:[%s6] sm:$0x1]
    %v247 = vlaneseq
    %v248 = vshrl.u32 %v247, 7
    %v249 = vsub.s32 0, %v248
    %v250 = vrot.slane %v245, %v249
    %v268 = vunpack.c.l.b16 %v229
    %v269 = vunpack.c.l.b16 %v230
    %v270 = vunpack.c.l.b16 %v231
    %v271 = vunpack.c.l.b16 %v232
    %v272 = vunpack.c.l.b16 %v233
    %v273 = vunpack.c.l.b16 %v234
    %v274 = vunpack.c.l.b16 %v235
    %v275 = vunpack.c.l.b16 %v236
    %v276 = vunpack.c.l.b16 %v237
    %v277 = vunpack.c.l.b16 %v238
    %v278 = vunpack.c.l.b16 %v239
    %v279 = vunpack.c.l.b16 %v240
    %v280 = vunpack.c.l.b16 %v241
    %v281 = vunpack.c.l.b16 %v242
    %v282 = vunpack.c.l.b16 %v243
    %v283 = vunpack.c.l.b16 %v244
    %v284 = vpack.c.b16 %v269, %v268
    %v285 = vpack.c.b16 %v271, %v270
    %v286 = vpack.c.b16 %v273, %v272
    %v287 = vpack.c.b16 %v275, %v274
    %v288 = vpack.c.b16 %v277, %v276
    %v289 = vpack.c.b16 %v279, %v278
    %v290 = vpack.c.b16 %v281, %v280
    %v291 = vpack.c.b16 %v283, %v282
    %300 = vmatprep.subr.bf16.mxu0 0
    %301 = vmatpush1.bf16.msra.mxu0 %v284
    %302 = vmatprep.subr.bf16.mxu0 0
    %303 = vmatpush1.bf16.msra.mxu0 %v285
    %304 = vmatprep.subr.bf16.mxu0 0
    %305 = vmatpush1.bf16.msra.mxu0 %v286
    %306 = vmatprep.subr.bf16.mxu0 0
    %307 = vmatpush1.bf16.msra.mxu0 %v287
    %308 = vmatprep.subr.bf16.mxu0 0
    %309 = vmatpush1.bf16.msra.mxu0 %v288
    %310 = vmatprep.subr.bf16.mxu0 0
    %311 = vmatpush1.bf16.msra.mxu0 %v289
    %312 = vmatprep.subr.bf16.mxu0 0
    %313 = vmatpush1.bf16.msra.mxu0 %v290
    %314 = vmatprep.subr.bf16.mxu0 0
    %315 = vmatpush1.bf16.msra.mxu0 %v291
    %316 = vmatprep.subr.bf16.mxu0 0
    %317 = vmatpush1.bf16.msra.mxu0 0
    %318 = vmatprep.subr.bf16.mxu0 0
    %319 = vmatpush1.bf16.msra.mxu0 0
    %320 = vmatprep.subr.bf16.mxu0 0
    %321 = vmatpush1.bf16.msra.mxu0 0
    %322 = vmatprep.subr.bf16.mxu0 0
    %323 = vmatpush1.bf16.msra.mxu0 0
    %324 = vmatprep.subr.bf16.mxu0 0
    %325 = vmatpush1.bf16.msra.mxu0 0
    %326 = vmatprep.subr.bf16.mxu0 0
    %327 = vmatpush1.bf16.msra.mxu0 0
    %328 = vmatprep.subr.bf16.mxu0 0
    %329 = vmatpush1.bf16.msra.mxu0 0
    %330 = vmatprep.subr.bf16.mxu0 0
    %331 = vmatpush1.bf16.msra.mxu0 0
    %332 = vmatprep.mubr.bf16.mxu0 0
    %333 = vmatmul.mubr.bf16.gmra.mrb[0].mxu0 %v227
    %v334 = vpop.f32.mrb[0].mxu0
    %v335 = vadd.f32 %v250, %v334
    %v336 = vpop.f32.mrb[0].mxu0
    %v337 = vpop.f32.mrb[0].mxu0
    %v338 = vadd.f32 %v250, %v337
    %v339 = vpop.f32.mrb[0].mxu0
    %340 = vmatprep.mubr.bf16.mxu0 0
    %341 = vmatmul.mubr.bf16.gmra.mrb[0].mxu0 %v228
    %v342 = vpop.f32.mrb[0].mxu0
    %v343 = vadd.f32 %v250, %v342
    %v344 = vpop.f32.mrb[0].mxu0
    %v345 = vpop.f32.mrb[0].mxu0
    %v346 = vpop.f32.mrb[0].mxu0
    %347 = vdwg.mxu0
    %348 = vst [vmem:[#allocation8] sm:$0xff] %v335
    %349 = vst [vmem:[#allocation8 + $0x8] sm:$0xff] %v338
    %350 = vst [vmem:[#allocation8 + $0x10] sm:$0xff] %v343
    // Predicated region
    $region42: #{tpu_custom_call.1} parent=1 // pred_check
      _
    $region43: #{tpu_custom_call.1} parent=1 // pred_check_branch
      %352 = sbr.rel (0) target = $region45
    $region44: #{tpu_custom_call.1} parent=1 // pred_region
      %s354 = ssub.s32 384, 384
      %355 = vsyncadd [#allocation4], %s354
      %s356 = sshll.u32 [#allocation8], 4
      %s357 = int_to_ptr.vmem [resolvable:$true] %s356
      %362 = dma.vmem_to_hbm [thread:$0]  %s357, 384, %s7, [#allocation4], 128, 128, 8
    $region45: #{tpu_custom_call.1} parent=1 // pred_fallthru
      _
    // Predicated region
    $region46: #{tpu_custom_call.1} parent=1 // pred_check
      _
    $region47: #{tpu_custom_call.1} parent=1 // pred_check_branch
      %364 = sbr.rel (0) target = $region49
    $region48: #{tpu_custom_call.1} parent=1 // pred_region
      %365 = dma.done [#allocation4], 384
    $region49: #{tpu_custom_call.1} parent=1 // pred_fallthru
      _
    %366 = vsyncpa [#allocation3], 1
    %367 = vsyncpa [#allocation6], 1
    %368 = vsyncpa [#allocation4], 1

</llo_original>
